<compile_context>
chip_gen: v6e
topology: v6e:2x2x1
jax: 0.10.0
libtpu: 0.0.40
codegen_flags: <defaults>
</compile_context>

<pallas_src>
import functools
import math

import jax
import jax.numpy as jnp
from jax.experimental import pallas as pl
from jax.experimental.pallas import tpu as pltpu


# ------------------------- VMEM-aware sizing ------------------------------- #

def _vmem_limit_bytes():
    try:
        cap = int(pltpu.get_tpu_info().vmem_capacity_bytes)
    except Exception:
        cap = 64 * 1024 * 1024  # conservative (v7x per-TensorCore VMEM)
    # leave headroom for double-buffering + in-kernel f32 temporaries
    return int(min(cap * 3 // 4, 100 * 1024 * 1024))


_VMEM_LIMIT = _vmem_limit_bytes()
_BLOCK_TARGET = max(64 * 1024, int(min(2 * 1024 * 1024, _VMEM_LIMIT // 16)))


def _compiler_params(semantics):
    return pltpu.CompilerParams(
        dimension_semantics=semantics,
        vmem_limit_bytes=_VMEM_LIMIT,
    )


def _pick_cols(n):
    """Lane-dense column count for a flat tensor of n elements."""
    for c in (4096, 2048, 1024, 512, 256, 128):
        if n % c == 0:
            return c
    return n


def _pick_lane_tile(L, C):
    """Lane tile for (1, C, T) channel-reduction blocks (multiple of 128)."""
    if L <= 128:
        return L
    max_elems = max(128, _BLOCK_TARGET // (4 * max(1, C)))
    t = min(L, (max_elems // 128) * 128)
    t = max(t, 128)
    if t >= L:
        return L
    # prefer a divisor of L (avoids a ragged tail block)
    cand = t
    while cand >= 128:
        if L % cand == 0:
            return cand
        cand -= 128
    return t  # ragged tail handled by Pallas (writes outside bounds dropped)


# ----------------------------- Pallas kernels ------------------------------ #
# Elementwise / row-wise kernels operate on (rows, cols) blocks; the reduction
# (if any) is over the last axis which is always fully inside the block.

def _sigmoid_kernel(x_ref, o_ref):
    x = x_ref[...].astype(jnp.float32)
    o_ref[...] = (1.0 / (1.0 + jnp.exp(-x))).astype(o_ref.dtype)


def _tanh_kernel(x_ref, o_ref):
    x = x_ref[...].astype(jnp.float32)
    o_ref[...] = jnp.tanh(x).astype(o_ref.dtype)


def _softmax_row_kernel(x_ref, o_ref):
    x = x_ref[...].astype(jnp.float32)
    m = jnp.max(x, axis=-1, keepdims=True)
    e = jnp.exp(x - m)
    s = jnp.sum(e, axis=-1, keepdims=True)
    o_ref[...] = (e / s).astype(o_ref.dtype)


def _logsoftmax_row_kernel(x_ref, o_ref):
    x = x_ref[...].astype(jnp.float32)
    m = jnp.max(x, axis=-1, keepdims=True)
    sh = x - m
    lse = jnp.log(jnp.sum(jnp.exp(sh), axis=-1, keepdims=True))
    o_ref[...] = (sh - lse).astype(o_ref.dtype)


def _argmax_row_kernel(x_ref, o_ref):
    # First-occurrence tie-break, matching torch.argmax.
    x = x_ref[...]
    ncols = x.shape[-1]
    idx = jax.lax.broadcasted_iota(jnp.int32, x.shape, x.ndim - 1)
    m = jnp.max(x, axis=-1, keepdims=True)
    cand = jnp.where(x == m, idx, ncols)
    o_ref[...] = jnp.min(cand, axis=-1, keepdims=True).astype(jnp.int32)


# Channel kernels operate on (1, C, T) blocks and reduce over axis=1 (the
# reduced axis), keeping the spatial axis T lane-dense.

def _softmax_ch_kernel(x_ref, o_ref):
    x = x_ref[...].astype(jnp.float32)
    m = jnp.max(x, axis=1, keepdims=True)
    e = jnp.exp(x - m)
    s = jnp.sum(e, axis=1, keepdims=True)
    o_ref[...] = (e / s).astype(o_ref.dtype)


def _logsoftmax_ch_kernel(x_ref, o_ref):
    x = x_ref[...].astype(jnp.float32)
    m = jnp.max(x, axis=1, keepdims=True)
    sh = x - m
    lse = jnp.log(jnp.sum(jnp.exp(sh), axis=1, keepdims=True))
    o_ref[...] = (sh - lse).astype(o_ref.dtype)


def _argmax_ch_kernel(x_ref, o_ref):
    x = x_ref[...]
    c = x.shape[1]
    idx = jax.lax.broadcasted_iota(jnp.int32, x.shape, 1)
    m = jnp.max(x, axis=1, keepdims=True)
    cand = jnp.where(x == m, idx, c)
    o_ref[...] = jnp.min(cand, axis=1, keepdims=True).astype(jnp.int32)


def _global_argmax_kernel(x_ref, o_ref, bval_ref, bidx_ref, *, total_rows):
    """Grid-tiled global argmax with running (max, idx) carry in SMEM."""
    step = pl.program_id(0)
    nsteps = pl.num_programs(0)
    x = x_ref[...].astype(jnp.float32)
    t, c = x.shape
    row_ids = jax.lax.broadcasted_iota(jnp.int32, (t, c), 0) + step * t
    col_ids = jax.lax.broadcasted_iota(jnp.int32, (t, c), 1)
    flat_ids = row_ids * c + col_ids
    valid = row_ids < total_rows
    neg_inf = jnp.float32(-jnp.inf)
    big = jnp.int32(total_rows * c)

    xv = jnp.where(valid, x, neg_inf)
    blk_max = jnp.max(xv)
    blk_idx = jnp.min(jnp.where((xv == blk_max) & valid, flat_ids, big))

    @pl.when(step == 0)
    def _init():
        bval_ref[0] = neg_inf
        bidx_ref[0] = big

    bv = bval_ref[0]
    bi = bidx_ref[0]
    better = (blk_max > bv) | ((blk_max == bv) & (blk_idx < bi))
    bval_ref[0] = jnp.where(better, blk_max, bv)
    bidx_ref[0] = jnp.where(better, blk_idx, bi)

    @pl.when(step == nsteps - 1)
    def _finalize():
        o_ref[...] = jnp.full(o_ref.shape, bidx_ref[0], jnp.int32)


# --------------------------- pallas_call plumbing --------------------------- #

def _rowwise_call(kernel, x2d, out_dtype, out_cols):
    """Run `kernel` over (rows, cols) blocks; reduction (if any) is in-block."""
    R, C = x2d.shape
    rt = _BLOCK_TARGET // max(1, C * 4)
    rt = max(8, (rt // 8) * 8)
    if rt >= R:
        rt = R
    grid = (pl.cdiv(R, rt),)
    return pl.pallas_call(
        kernel,
        out_shape=jax.ShapeDtypeStruct((R, out_cols), out_dtype),
        grid=grid,
        in_specs=[pl.BlockSpec((rt, C), lambda i: (i, 0))],
        out_specs=pl.BlockSpec((rt, out_cols), lambda i: (i, 0)),
        compiler_params=_compiler_params(("parallel",)),
    )(x2d)


def _channel_call(kernel, x3, out_dtype, out_channels):
    """Run `kernel` over (1, C, T) blocks of a (B, C, L) tensor (reduce axis=1)."""
    B, C, L = x3.shape
    T = _pick_lane_tile(L, C)
    grid = (B, pl.cdiv(L, T))
    return pl.pallas_call(
        kernel,
        out_shape=jax.ShapeDtypeStruct((B, out_channels, L), out_dtype),
        grid=grid,
        in_specs=[pl.BlockSpec((1, C, T), lambda b, j: (b, 0, j))],
        out_specs=pl.BlockSpec((1, out_channels, T), lambda b, j: (b, 0, j)),
        compiler_params=_compiler_params(("parallel", "parallel")),
    )(x3)


def _elementwise(kernel, x):
    n = x.size
    if n == 0:
        return x
    cols = _pick_cols(n)
    x2d = x.reshape(n // cols, cols)
    out2d = _rowwise_call(kernel, x2d, x.dtype, cols)
    return out2d.reshape(x.shape)


def _reduce_dispatch(row_kernel, ch_kernel, x, axis, out_dtype, is_argmax=False):
    axis = axis % x.ndim
    shape = x.shape
    if axis == x.ndim - 1:
        # Reduction over the last (lane) axis: row-wise kernel, no transpose.
        lead = math.prod(shape[:-1]) if len(shape) > 1 else 1
        x2d = x.reshape(lead, shape[-1])
        out_cols = 1 if is_argmax else shape[-1]
        out2d = _rowwise_call(row_kernel, x2d, out_dtype, out_cols)
        if is_argmax:
            return out2d.reshape(shape[:-1])
        return out2d.reshape(shape)
    # Reduction over a non-last axis: (B, A, L) channel kernel, spatial axis
    # stays lane-dense, no transposes.
    B = math.prod(shape[:axis]) if axis > 0 else 1
    A = shape[axis]
    L = math.prod(shape[axis + 1:])
    x3 = x.reshape(B, A, L)
    out_c = 1 if is_argmax else A
    out3 = _channel_call(ch_kernel, x3, out_dtype, out_c)
    if is_argmax:
        return out3.reshape(shape[:axis] + shape[axis + 1:])
    return out3.reshape(shape)


def _global_argmax(x):
    n = x.size
    cols = _pick_cols(n)
    rows = n // cols
    x2d = x.reshape(rows, cols)
    rt = _BLOCK_TARGET // max(1, cols * 4)
    rt = max(8, (rt // 8) * 8)
    if rt >= rows:
        rt = rows
    grid = (pl.cdiv(rows, rt),)
    kernel = functools.partial(_global_argmax_kernel, total_rows=rows)
    out = pl.pallas_call(
        kernel,
        out_shape=jax.ShapeDtypeStruct((1, 128), jnp.int32),
        grid=grid,
        in_specs=[pl.BlockSpec((rt, cols), lambda i: (i, 0))],
        out_specs=pl.BlockSpec((1, 128), lambda i: (0, 0)),
        scratch_shapes=[pltpu.SMEM((1,), jnp.float32),
                        pltpu.SMEM((1,), jnp.int32)],
        compiler_params=_compiler_params(("arbitrary",)),
    )(x2d)
    return out[0, 0].reshape(())


# ------------------------------ public ops ---------------------------------- #

def _default_softmax_dim(ndim):
    # Mirrors torch.nn.functional._get_softmax_dim
    return 0 if ndim in (0, 1, 3) else 1


def sigmoid(x):
    return _elementwise(_sigmoid_kernel, x)


def tanh(x):
    return _elementwise(_tanh_kernel, x)


def softmax(x, dim=None):
    if dim is None:
        dim = _default_softmax_dim(x.ndim)
    return _reduce_dispatch(_softmax_row_kernel, _softmax_ch_kernel,
                            x, dim, x.dtype)


def log_softmax(x, dim=None):
    if dim is None:
        dim = _default_softmax_dim(x.ndim)
    return _reduce_dispatch(_logsoftmax_row_kernel, _logsoftmax_ch_kernel,
                            x, dim, x.dtype)


def argmax(x, dim=None):
    if dim is None:
        return _global_argmax(x)
    return _reduce_dispatch(_argmax_row_kernel, _argmax_ch_kernel,
                            x, dim, jnp.int32, is_argmax=True)


class Activation:
    """JAX/Pallas port of the PyTorch Activation module."""

    def __init__(self, name, **params):
        if name is None or name == 'identity':
            self.activation = lambda x: x
        elif name == 'sigmoid':
            self.activation = sigmoid
        elif name == 'softmax2d':
            self.activation = functools.partial(softmax, dim=1, **params)
        elif name == 'softmax':
            self.activation = functools.partial(softmax, **params)
        elif name == 'logsoftmax':
            self.activation = functools.partial(log_softmax, **params)
        elif name == 'tanh':
            self.activation = tanh
        elif name == 'argmax':
            self.activation = functools.partial(argmax, **params)
        elif name == 'argmax2d':
            self.activation = functools.partial(argmax, dim=1, **params)
        elif callable(name):
            self.activation = name(**params)
        else:
            raise ValueError(
                'Activation should be callable/sigmoid/softmax/logsoftmax/'
                'tanh/None; got {}'.format(name))

    def __call__(self, x):
        return self.activation(x)


# --------------------------------- demo ------------------------------------- #

if __name__ == "__main__":
    key = jax.random.PRNGKey(0)
    x = jax.random.normal(key, (2, 4, 16, 16), dtype=jnp.float32)  # NCHW

    # identity
    y_id = Activation('identity')(x)
    assert y_id.shape == x.shape

    # sigmoid
    y_sig = jax.block_until_ready(Activation('sigmoid')(x))
    assert jnp.allclose(y_sig, jax.nn.sigmoid(x), atol=1e-5)

    # tanh
    y_tanh = jax.block_until_ready(Activation('tanh')(x))
    assert jnp.allclose(y_tanh, jnp.tanh(x), atol=1e-5)

    # softmax2d (softmax over channel dim=1) -- channel-kernel path
    y_sm2d = jax.block_until_ready(Activation('softmax2d')(x))
    assert y_sm2d.shape == x.shape
    assert jnp.allclose(y_sm2d, jax.nn.softmax(x, axis=1), atol=1e-5)

    # softmax with explicit dim=1 -- channel-kernel path
    y_sm = jax.block_until_ready(Activation('softmax', dim=1)(x))
    assert jnp.allclose(y_sm, jax.nn.softmax(x, axis=1), atol=1e-5)

    # softmax over last dim -- row-wise path
    y_sm_last = jax.block_until_ready(Activation('softmax', dim=-1)(x))
    assert jnp.allclose(y_sm_last, jax.nn.softmax(x, axis=-1), atol=1e-5)

    # logsoftmax with explicit dim=1 -- channel-kernel path
    y_lsm = jax.block_until_ready(Activation('logsoftmax', dim=1)(x))
    assert jnp.allclose(y_lsm, jax.nn.log_softmax(x, axis=1), atol=1e-5)

    # argmax2d (argmax over channel dim=1) -> shape (N, H, W)
    y_am2d = jax.block_until_ready(Activation('argmax2d')(x))
    assert y_am2d.shape == (2, 16, 16)
    assert jnp.array_equal(y_am2d, jnp.argmax(x, axis=1).astype(jnp.int32))

    # argmax over a middle dim -- channel-kernel path
    y_am_mid = jax.block_until_ready(Activation('argmax', dim=2)(x))
    assert y_am_mid.shape == (2, 4, 16)
    assert jnp.array_equal(y_am_mid, jnp.argmax(x, axis=2).astype(jnp.int32))

    # argmax over last dim -- row-wise path
    y_am_last = jax.block_until_ready(Activation('argmax', dim=-1)(x))
    assert y_am_last.shape == (2, 4, 16)
    assert jnp.array_equal(y_am_last, jnp.argmax(x, axis=-1).astype(jnp.int32))

    # argmax with dim=None -> scalar flat index (grid-tiled global argmax)
    y_am = jax.block_until_ready(Activation('argmax')(x))
    assert int(y_am) == int(jnp.argmax(x))

    print("KERNEL_OK")
</pallas_src>

<mosaic_0001>
module attributes {stable_mosaic.version = 11 : i64} {
  func.func @_sigmoid_kernel(%arg0: i32, %arg1: memref<1x2048xf32, #tpu.memory_space<vmem>>, %arg2: memref<1x2048xf32, #tpu.memory_space<vmem>>) attributes {dimension_semantics = [#tpu.dimension_semantics<parallel>], iteration_bounds = array<i64: 1>, scalar_prefetch = 0 : i64, scratch_operands = 0 : i64, tpu.core_type = #tpu.core_type<tc>, window_params = [{transform_indices = @transform_0, window_bounds = array<i64: 1, 2048>}, {transform_indices = @transform_1, window_bounds = array<i64: 1, 2048>}]} {
    %c0 = arith.constant 0 : index
    %c0_0 = arith.constant 0 : index
    %0 = vector.load %arg1[%c0, %c0_0] : memref<1x2048xf32, #tpu.memory_space<vmem>>, vector<1x2048xf32>
    %cst = arith.constant 0.000000e+00 : f32
    %1 = vector.broadcast %cst : f32 to vector<1x2048xf32>
    %2 = arith.subf %1, %0 : vector<1x2048xf32>
    %3 = math.exp %2 : vector<1x2048xf32>
    %cst_1 = arith.constant 1.000000e+00 : f32
    %4 = vector.broadcast %cst_1 : f32 to vector<1x2048xf32>
    %5 = arith.addf %4, %3 : vector<1x2048xf32>
    %cst_2 = arith.constant 1.000000e+00 : f32
    %6 = vector.broadcast %cst_2 : f32 to vector<1x2048xf32>
    %7 = arith.divf %6, %5 : vector<1x2048xf32>
    %c0_3 = arith.constant 0 : index
    %c0_4 = arith.constant 0 : index
    %8 = vector.load %arg2[%c0_3, %c0_4] : memref<1x2048xf32, #tpu.memory_space<vmem>>, vector<1x2048xf32>
    tpu.vector_store %arg2[%c0_3, %c0_4], %7 {strides = array<i32>} : memref<1x2048xf32, #tpu.memory_space<vmem>>, vector<1x2048xf32>,
    return
  }
  func.func @transform_0(%arg0: i32) -> (i32, i32) {
    %c0_i32 = arith.constant 0 : i32
    %c0_i32_0 = arith.constant 0 : i32
    return %arg0, %c0_i32 : i32, i32
  }
  func.func @transform_1(%arg0: i32) -> (i32, i32) {
    %c0_i32 = arith.constant 0 : i32
    %c0_i32_0 = arith.constant 0 : i32
    return %arg0, %c0_i32 : i32, i32
  }
}

</mosaic_0001>

<llo_original>
// kernel: tpu_custom_call.1
$region0: #{tpu_custom_call.1}
  #allocation0 [shape = 'u32[]', space=smem, size = 0x4, offset = 0x4, fixed_abs, tag = 'smem constant byte address 0x4 - core index']
  #allocation1 [shape = 'u32[144,128]{1,0:T(1,128)}', space=vmem, size = 0x12000, scoped, tag = 'internal scratch']
  %s0 = inlined_call_operand.hbm [shape: f32[1,2048], index: 0, kind: input, shape index: {}]
  %s1 = inlined_call_operand.hbm [shape: f32[1,2048], index: 1, kind: output, shape index: {}]
  %s2 = sld [smem:[#allocation0]]
  $region18: #{tpu_custom_call.1} parent=0
    _
  %s4 = ssub.s32 1, %s2
  %s5 = scalar_select 0, %s4, %s2
  $region1: #{tpu_custom_call.1} parent=0
    #allocation2 [shape = 'u8[8192]{0}', space=vmem, size = 0x2000, scoped, tag = 'input window, operand 0, single buffered']
    #allocation3 [shape = 's32[1]{0}', space=sflag, size = 0x4, scoped, tag = 'scoped memory for tpu_custom_call.1']
    #allocation4 [shape = 's32[1]{0}', space=sflag, size = 0x4, scoped, tag = 'scoped memory for tpu_custom_call.1']
    #allocation5 [shape = 'u8[8192]{0}', space=vmem, size = 0x2000, scoped, tag = 'output window, operand 0, single buffered']
    %6 = vsyncpa [#allocation3], 0
    %7 = vsyncpa [#allocation4], 0
    // Predicated region
    $region2: #{tpu_custom_call.1} parent=1 // pred_check
      _
    $region3: #{tpu_custom_call.1} parent=1 // pred_check_branch
      %9 = sbr.rel (0) target = $region5
    $region4: #{tpu_custom_call.1} parent=1 // pred_region
      %s11 = ssub.s32 256, 256
      %12 = vsyncadd [#allocation3], %s11
      %s14 = sshll.u32 [#allocation2], 4
      %s15 = int_to_ptr.vmem [resolvable:$true] %s14
      %17 = dma.hbm_to_vmem [thread:$0]  %s0, 256, %s15, [#allocation3]
    $region5: #{tpu_custom_call.1} parent=1 // pred_fallthru
      _
    // Predicated region
    $region6: #{tpu_custom_call.1} parent=1 // pred_check
      _
    $region7: #{tpu_custom_call.1} parent=1 // pred_check_branch
      %19 = sbr.rel (0) target = $region9
    $region8: #{tpu_custom_call.1} parent=1 // pred_region
      %20 = dma.done [#allocation3], 256
    $region9: #{tpu_custom_call.1} parent=1 // pred_fallthru
      _
    %v21 = vld [vmem:[#allocation2] sm:$0xff]
    %v22 = vld [vmem:[#allocation2 + $0x8] sm:$0xff]
    %v23 = vsub.f32 0.0, %v21
    %v24 = vsub.f32 0.0, %v22
    %v25 = vmul.f32 %v23, 1.442695
    %v26 = vpow.pop %v25
    %v27 = vmul.f32 %v24, 1.442695
    %v28 = vpow.pop %v27
    %v29 = vadd.f32 %v26, 1.0
    %v30 = vadd.f32 %v28, 1.0
    %v31 = vrcp.pop %v29
    %v32 = vmul.f32 1.0, %v31
    %v33 = vrcp.pop %v30
    %v34 = vmul.f32 1.0, %v33
    %35 = vst [vmem:[#allocation5] sm:$0xff] %v32
    %36 = vst [vmem:[#allocation5 + $0x8] sm:$0xff] %v34
    // Predicated region
    $region10: #{tpu_custom_call.1} parent=1 // pred_check
      _
    $region11: #{tpu_custom_call.1} parent=1 // pred_check_branch
      %38 = sbr.rel (0) target = $region13
    $region12: #{tpu_custom_call.1} parent=1 // pred_region
      %s40 = ssub.s32 256, 256
      %41 = vsyncadd [#allocation4], %s40
      %s43 = sshll.u32 [#allocation5], 4
      %s44 = int_to_ptr.vmem [resolvable:$true] %s43
      %46 = dma.vmem_to_hbm [thread:$0]  %s44, 256, %s1, [#allocation4]
    $region13: #{tpu_custom_call.1} parent=1 // pred_fallthru
      _
    // Predicated region
    $region14: #{tpu_custom_call.1} parent=1 // pred_check
      _
    $region15: #{tpu_custom_call.1} parent=1 // pred_check_branch
      %48 = sbr.rel (0) target = $region17
    $region16: #{tpu_custom_call.1} parent=1 // pred_region
      %49 = dma.done [#allocation4], 256
    $region17: #{tpu_custom_call.1} parent=1 // pred_fallthru
      _
    %50 = vsyncpa [#allocation3], 1
    %51 = vsyncpa [#allocation4], 1

</llo_original>
